<compile_context>
chip_gen: v7x
topology: tpu7x:2x2x1
jax: 0.10.0
libtpu: 0.0.40
codegen_flags: <defaults>
</compile_context>

<pallas_src>
import functools

import jax
import jax.numpy as jnp
from jax.experimental import pallas as pl
from jax.experimental.pallas import tpu as pltpu

_MIB = 2 ** 20


def _round_up(n: int, m: int) -> int:
    return (n + m - 1) // m * m


def _choose_tm(B: int, tm_max: int) -> int:
    """Batch tile: minimal padding; sublane-aligned, 128-aligned when tiled."""
    if B <= tm_max:
        return max(8, _round_up(B, 8))
    best_tm, best_pad = 128, _round_up(B, 128) - B
    for cand in range(256, tm_max + 1, 128):
        pad = _round_up(B, cand) - B
        if pad <= best_pad:            # prefer larger tiles on ties
            best_tm, best_pad = cand, pad
    return best_tm


def _lane_divisors(total: int):
    """Divisors of `total` that are multiples of 128, descending."""
    return [d for d in range(total, 127, -128) if total % d == 0]


def _silu(x):
    # Transcendental in f32 (v5e has no bf16 VPU/EUP), MXU fed in native dtype.
    if x.dtype == jnp.float32:
        return x * jax.nn.sigmoid(x)
    xf = x.astype(jnp.float32)
    return (xf * jax.nn.sigmoid(xf)).astype(x.dtype)


# ---------------------------------------------------------------------------
# Kernel bodies
# ---------------------------------------------------------------------------
def _single_k_kernel(x_ref, w_ref, b_ref, o_ref):
    """Whole reduction in one step: no scratch, no phase branches."""
    h = _silu(x_ref[...])
    y = jnp.dot(h, w_ref[...], preferred_element_type=jnp.float32)
    o_ref[...] = (y + b_ref[...].astype(jnp.float32)).astype(o_ref.dtype)


def _multi_k_kernel(x_ref, w_ref, b_ref, o_ref, acc_ref):
    """K-streaming path with a resident f32 accumulator."""
    k = pl.program_id(2)

    @pl.when(k == 0)
    def _init():
        # Initialize with the bias: removes one (tm, tn) f32 add from the
        # epilogue.
        acc_ref[...] = jnp.broadcast_to(
            b_ref[...].astype(jnp.float32), acc_ref.shape)

    h = _silu(x_ref[...])
    acc_ref[...] += jnp.dot(h, w_ref[...], preferred_element_type=jnp.float32)

    @pl.when(k == pl.num_programs(2) - 1)
    def _finalize():
        o_ref[...] = acc_ref[...].astype(o_ref.dtype)


# ---------------------------------------------------------------------------
# Wrapper
# ---------------------------------------------------------------------------
def embedding_block(x, w, b, *, tm_max=256, tk_max=512,
                    vmem_budget_bytes=40 * _MIB):
    """SiLU(x) @ w.T + b  (EmbeddingBlock.forward)."""
    B, E = x.shape
    C, E2 = w.shape
    assert E == E2 and b.shape == (C,)
    out_dtype = x.dtype
    xb = jnp.dtype(x.dtype).itemsize
    wb = jnp.dtype(w.dtype).itemsize
    bb = jnp.dtype(b.dtype).itemsize
    ob = jnp.dtype(out_dtype).itemsize

    # ---- tiles -------------------------------------------------------------
    tm = _choose_tm(B, tm_max)
    Bp = _round_up(B, tm)
    n_m = Bp // tm
    # Lane-dense output; 256-aligned fully feeds the 2x256x256 MXUs (v6e/v7x).
    Cp = 128 if C <= 128 else _round_up(C, 256)

    def single_k_footprint(t):
        return (2 * tm * E * xb          # x tile (double-buffered)
                + 2 * E * t * wb         # weight slab
                + 2 * t * bb             # bias
                + 2 * tm * t * ob)       # output tile

    # Largest channel tile that fits the budget with the full K resident.
    tn = next((t for t in _lane_divisors(Cp)
               if single_k_footprint(t) <= vmem_budget_bytes), None)

    if tn is not None:
        # ---------------- single-K path: resident weight, no accumulator ----
        # Give both v7x TensorCores work when the batch axis is trivial.
        if n_m == 1 and tn == Cp and Cp >= 256:
            smaller = [t for t in _lane_divisors(Cp)
                       if t < Cp and single_k_footprint(t) <= vmem_budget_bytes]
            if smaller:
                tn = smaller[0]
        n_n = Cp // tn

        xp = x if Bp == B else jnp.pad(x, ((0, Bp - B), (0, 0)))
        wt = jnp.transpose(w)                                   # (E, C)
        wp = wt if Cp == C else jnp.pad(wt, ((0, 0), (0, Cp - C)))
        bp = (b if Cp == C else jnp.pad(b, (0, Cp - C))).reshape(1, Cp)

        footprint = single_k_footprint(tn)
        vmem_limit = int(min(56 * _MIB, max(footprint + 4 * _MIB, 32 * _MIB)))

        # Grid order (n, m): weight/bias block index only changes with the
        # outer n index, so the weight is fetched from HBM once per column
        # tile (once total when n_n == 1), never per batch tile.
        # TODO(synk): pipeline_mode=pl.Buffered(1) on the grid-invariant weight
        # would halve its VMEM footprint; kept at the default double buffer.
        out = pl.pallas_call(
            _single_k_kernel,
            out_shape=jax.ShapeDtypeStruct((Bp, Cp), out_dtype),
            grid=(n_n, n_m),
            in_specs=[
                pl.BlockSpec((tm, E), lambda j, i: (i, 0)),     # x
                pl.BlockSpec((E, tn), lambda j, i: (0, j)),     # weight
                pl.BlockSpec((1, tn), lambda j, i: (0, j)),     # bias
            ],
            out_specs=pl.BlockSpec((tm, tn), lambda j, i: (i, j)),
            compiler_params=pltpu.CompilerParams(
                dimension_semantics=("parallel", "parallel"),
                vmem_limit_bytes=vmem_limit),
            cost_estimate=pl.CostEstimate(
                flops=2 * Bp * E * Cp,
                transcendentals=Bp * E,
                bytes_accessed=(n_n * Bp * E * xb + E * Cp * wb
                                + Cp * bb + Bp * Cp * ob)),
        )(xp, wp, bp)
    else:
        # ---------------- K-streaming fallback (very large emb_dim) ---------
        Ep = _round_up(E, 128)
        tk = min(_round_up(tk_max, 128), Ep)
        while Ep % tk != 0:                 # tk must divide Ep; 128 always does
            tk -= 128
        n_k = Ep // tk

        def multi_k_footprint(t):
            return (2 * tm * tk * xb + 2 * tk * t * wb + 2 * t * bb
                    + 2 * tm * t * ob + tm * t * 4)             # + f32 acc

        tn = next((t for t in _lane_divisors(Cp)
                   if multi_k_footprint(t) <= vmem_budget_bytes), 128)
        n_n = Cp // tn

        xp = x if (Bp == B and Ep == E) else jnp.pad(
            x, ((0, Bp - B), (0, Ep - E)))
        wt = jnp.transpose(w)
        wp = wt if (Ep == E and Cp == C) else jnp.pad(
            wt, ((0, Ep - E), (0, Cp - C)))
        bp = (b if Cp == C else jnp.pad(b, (0, Cp - C))).reshape(1, Cp)

        footprint = multi_k_footprint(tn)
        vmem_limit = int(min(56 * _MIB, max(footprint + 4 * _MIB, 32 * _MIB)))

        out = pl.pallas_call(
            _multi_k_kernel,
            out_shape=jax.ShapeDtypeStruct((Bp, Cp), out_dtype),
            grid=(n_n, n_m, n_k),
            in_specs=[
                pl.BlockSpec((tm, tk), lambda j, i, k: (i, k)),   # x
                pl.BlockSpec((tk, tn), lambda j, i, k: (k, j)),   # weight
                pl.BlockSpec((1, tn), lambda j, i, k: (0, j)),    # bias
            ],
            out_specs=pl.BlockSpec((tm, tn), lambda j, i, k: (i, j)),
            scratch_shapes=[pltpu.VMEM((tm, tn), jnp.float32)],
            compiler_params=pltpu.CompilerParams(
                dimension_semantics=("parallel", "parallel", "arbitrary"),
                vmem_limit_bytes=vmem_limit),
            cost_estimate=pl.CostEstimate(
                flops=2 * Bp * Ep * Cp,
                transcendentals=Bp * Ep,
                bytes_accessed=(n_n * Bp * Ep * xb + n_m * Ep * Cp * wb
                                + Cp * bb + Bp * Cp * ob)),
        )(xp, wp, bp)

    return out[:B, :C]


if __name__ == "__main__":
    # Small shapes consistent with the module's forward: x is (batch, emb_dim).
    batch, emb_dim, channels = 8, 32, 64

    key = jax.random.PRNGKey(0)
    kx, kw, kb = jax.random.split(key, 3)

    x = jax.random.normal(kx, (batch, emb_dim), dtype=jnp.float32)

    # Deterministic init mirroring nn.Linear's U(-1/sqrt(fan_in), 1/sqrt(fan_in)).
    bound = 1.0 / (emb_dim ** 0.5)
    w = jax.random.uniform(kw, (channels, emb_dim), dtype=jnp.float32,
                           minval=-bound, maxval=bound)   # PyTorch layout (C, E)
    b = jax.random.uniform(kb, (channels,), dtype=jnp.float32,
                           minval=-bound, maxval=bound)

    ref = jax.nn.silu(x) @ w.T + b

    # Common path: jitted wrapper (pads/transpose fuse), single-K fast kernel.
    fwd = jax.jit(embedding_block)
    out = jax.block_until_ready(fwd(x, w, b))
    assert out.shape == (batch, channels)
    assert jnp.allclose(out, ref, atol=1e-5, rtol=1e-5)

    # Also exercise the K-streaming accumulator path by shrinking the budget.
    fwd_stream = jax.jit(functools.partial(embedding_block,
                                           vmem_budget_bytes=16 * 1024))
    out2 = jax.block_until_ready(fwd_stream(x, w, b))
    assert jnp.allclose(out2, ref, atol=1e-5, rtol=1e-5)

    print("KERNEL_OK")
</pallas_src>

<mosaic_0001>
module attributes {stable_mosaic.version = 11 : i64} {
  func.func @_single_k_kernel(%arg0: i32, %arg1: i32, %arg2: memref<8x32xf32, #tpu.memory_space<vmem>>, %arg3: memref<32x128xf32, #tpu.memory_space<vmem>>, %arg4: memref<1x128xf32, #tpu.memory_space<vmem>>, %arg5: memref<8x128xf32, #tpu.memory_space<vmem>>) attributes {dimension_semantics = [#tpu.dimension_semantics<parallel>, #tpu.dimension_semantics<parallel>], iteration_bounds = array<i64: 1, 1>, scalar_prefetch = 0 : i64, scratch_operands = 0 : i64, tpu.core_type = #tpu.core_type<tc>, window_params = [{transform_indices = @transform_0, window_bounds = array<i64: 8, 32>}, {transform_indices = @transform_1, window_bounds = array<i64: 32, 128>}, {transform_indices = @transform_2, window_bounds = array<i64: 1, 128>}, {transform_indices = @transform_3, window_bounds = array<i64: 8, 128>}]} {
    %c0 = arith.constant 0 : index
    %c0_0 = arith.constant 0 : index
    %0 = vector.load %arg2[%c0, %c0_0] : memref<8x32xf32, #tpu.memory_space<vmem>>, vector<8x32xf32>
    %1 = arith.negf %0 : vector<8x32xf32>
    %2 = math.exp %1 : vector<8x32xf32>
    %cst = arith.constant 1.000000e+00 : f32
    %3 = vector.broadcast %cst : f32 to vector<8x32xf32>
    %4 = arith.addf %3, %2 : vector<8x32xf32>
    %5 = arith.divf %3, %4 : vector<8x32xf32>
    %6 = arith.mulf %0, %5 : vector<8x32xf32>
    %c0_1 = arith.constant 0 : index
    %c0_2 = arith.constant 0 : index
    %7 = vector.load %arg3[%c0_1, %c0_2] : memref<32x128xf32, #tpu.memory_space<vmem>>, vector<32x128xf32>
    %cst_3 = arith.constant dense<0.000000e+00> : vector<8x128xf32>
    %8 = tpu.matmul %6, %7, %cst_3 {dimension_numbers = #tpu.dot_dimension_numbers<[1], [0], [0], [1], [0, 0, 1, 1], [], []>} : vector<8x32xf32>, vector<32x128xf32>, vector<8x128xf32> -> vector<8x128xf32>
    %c0_4 = arith.constant 0 : index
    %c0_5 = arith.constant 0 : index
    %9 = vector.load %arg4[%c0_4, %c0_5] : memref<1x128xf32, #tpu.memory_space<vmem>>, vector<1x128xf32>
    %10 = vector.broadcast %9 : vector<1x128xf32> to vector<8x128xf32>
    %11 = arith.addf %8, %10 : vector<8x128xf32>
    %c0_6 = arith.constant 0 : index
    %c0_7 = arith.constant 0 : index
    %12 = vector.load %arg5[%c0_6, %c0_7] : memref<8x128xf32, #tpu.memory_space<vmem>>, vector<8x128xf32>
    tpu.vector_store %arg5[%c0_6, %c0_7], %11 {strides = array<i32>} : memref<8x128xf32, #tpu.memory_space<vmem>>, vector<8x128xf32>,
    return
  }
  func.func @transform_0(%arg0: i32, %arg1: i32) -> (i32, i32) {
    %c0_i32 = arith.constant 0 : i32
    %c0_i32_0 = arith.constant 0 : i32
    return %arg1, %c0_i32 : i32, i32
  }
  func.func @transform_1(%arg0: i32, %arg1: i32) -> (i32, i32) {
    %c0_i32 = arith.constant 0 : i32
    %c0_i32_0 = arith.constant 0 : i32
    return %c0_i32, %arg0 : i32, i32
  }
  func.func @transform_2(%arg0: i32, %arg1: i32) -> (i32, i32) {
    %c0_i32 = arith.constant 0 : i32
    %c0_i32_0 = arith.constant 0 : i32
    return %c0_i32, %arg0 : i32, i32
  }
  func.func @transform_3(%arg0: i32, %arg1: i32) -> (i32, i32) {
    %c0_i32 = arith.constant 0 : i32
    return %arg1, %arg0 : i32, i32
  }
}

</mosaic_0001>

<llo_original>
// kernel: embedding_block.1
$region0: #{embedding_block.1}
  #allocation0 [shape = 'u32[]', space=smem, size = 0x4, offset = 0x4, fixed_abs, tag = 'smem constant byte address 0x4 - core index']
  #allocation1 [shape = 'u32[144,128]{1,0:T(1,128)}', space=vmem, size = 0x12000, scoped, tag = 'internal scratch']
  %s0 = inlined_call_operand.vmem [shape: f32[8,32], index: 0, kind: input, shape index: {}]
  %s1 = inlined_call_operand.vmem [shape: f32[32,128], index: 1, kind: input, shape index: {}]
  %s2 = inlined_call_operand.vmem [shape: f32[1,128], index: 2, kind: input, shape index: {}]
  %s3 = inlined_call_operand.hbm [shape: f32[8,128], index: 3, kind: output, shape index: {}]
  %s4 = sld [smem:[#allocation0]]
  $region22: #{embedding_block.1} parent=0
    _
  %s6 = ssub.s32 1, %s4
  %s7 = scalar_select 0, %s6, %s4
  $region1: #{embedding_block.1} parent=0
    #allocation2 [shape = 'u8[4096]{0}', space=vmem, size = 0x1000, scoped, tag = 'output window, operand 0, single buffered']
    #allocation3 [shape = 's32[1]{0}', space=sflag, size = 0x4, scoped, tag = 'scoped memory for embedding_block.1']
    %8 = vsyncpa [#allocation3], 0
    // Predicated region
    $region2: #{embedding_block.1} parent=1 // pred_check
      _
    $region3: #{embedding_block.1} parent=1 // pred_check_branch
      %10 = sbr.rel (0) target = $region5
    $region4: #{embedding_block.1} parent=1 // pred_region
      _
    $region5: #{embedding_block.1} parent=1 // pred_fallthru
      _
    // Predicated region
    $region6: #{embedding_block.1} parent=1 // pred_check
      _
    $region7: #{embedding_block.1} parent=1 // pred_check_branch
      %12 = sbr.rel (0) target = $region9
    $region8: #{embedding_block.1} parent=1 // pred_region
      _
    $region9: #{embedding_block.1} parent=1 // pred_fallthru
      _
    // Predicated region
    $region10: #{embedding_block.1} parent=1 // pred_check
      _
    $region11: #{embedding_block.1} parent=1 // pred_check_branch
      %14 = sbr.rel (0) target = $region13
    $region12: #{embedding_block.1} parent=1 // pred_region
      _
    $region13: #{embedding_block.1} parent=1 // pred_fallthru
      _
    %v15 = vld [vmem:[%s0] sm:$0xff]
    %v16 = vxor.u32 %v15, 2147483648
    %v17 = vmul.f32 %v16, 1.442695
    %v18 = vpow.pop %v17
    %v19 = vadd.f32 %v18, 1.0
    %v20 = vrcp.pop %v19
    %v21 = vmul.f32 1.0, %v20
    %v22 = vmul.f32 %v15, %v21
    %v23 = vld [vmem:[%s1] sm:$0xff]
    %v24 = vld [vmem:[%s1 + $0x8] sm:$0xff]
    %v25 = vld [vmem:[%s1 + $0x10] sm:$0xff]
    %v26 = vld [vmem:[%s1 + $0x18] sm:$0xff]
    %v27 = vld [vmem:[%s2] sm:$0x1]
    %v29 = vlaneseq
    %v30 = vshrl.u32 %v29, 7
    %v31 = vsub.s32 0, %v30
    %v32 = vrot.slane %v27, %v31
    %vm34 = vcmask 261120
    %v36 = vsel %vm34, %v22, 0
    %38 = vmatprep.subr.mxu0 0.0
    %39 = vmatpush1.msra.mxu0 %v23
    %40 = vmatprep.subr.mxu0 0.0
    %41 = vmatpush1.msra.mxu0 %v24
    %42 = vmatprep.subr.mxu0 0.0
    %43 = vmatpush1.msra.mxu0 %v25
    %44 = vmatprep.subr.mxu0 0.0
    %45 = vmatpush1.msra.mxu0 %v26
    %46 = vmatprep.subr.mxu0 0.0
    %47 = vmatpush1.msra.mxu0 0.0
    %48 = vmatprep.subr.mxu0 0.0
    %49 = vmatpush1.msra.mxu0 0.0
    %50 = vmatprep.subr.mxu0 0.0
    %51 = vmatpush1.msra.mxu0 0.0
    %52 = vmatprep.subr.mxu0 0.0
    %53 = vmatpush1.msra.mxu0 0.0
    %54 = vmatprep.subr.mxu0 0.0
    %55 = vmatpush1.msra.mxu0 0.0
    %56 = vmatprep.subr.mxu0 0.0
    %57 = vmatpush1.msra.mxu0 0.0
    %58 = vmatprep.subr.mxu0 0.0
    %59 = vmatpush1.msra.mxu0 0.0
    %60 = vmatprep.subr.mxu0 0.0
    %61 = vmatpush1.msra.mxu0 0.0
    %62 = vmatprep.subr.mxu0 0.0
    %63 = vmatpush1.msra.mxu0 0.0
    %64 = vmatprep.subr.mxu0 0.0
    %65 = vmatpush1.msra.mxu0 0.0
    %66 = vmatprep.subr.mxu0 0.0
    %67 = vmatpush1.msra.mxu0 0.0
    %68 = vmatprep.subr.mxu0 0.0
    %69 = vmatpush1.msra.mxu0 0.0
    %70 = vmatprep.subr.mxu0 0.0
    %71 = vmatpush1.msra.mxu0 0.0
    %72 = vmatprep.subr.mxu0 0.0
    %73 = vmatpush1.msra.mxu0 0.0
    %74 = vmatprep.subr.mxu0 0.0
    %75 = vmatpush1.msra.mxu0 0.0
    %76 = vmatprep.subr.mxu0 0.0
    %77 = vmatpush1.msra.mxu0 0.0
    %78 = vmatprep.subr.mxu0 0.0
    %79 = vmatpush1.msra.mxu0 0.0
    %80 = vmatprep.subr.mxu0 0.0
    %81 = vmatpush1.msra.mxu0 0.0
    %82 = vmatprep.subr.mxu0 0.0
    %83 = vmatpush1.msra.mxu0 0.0
    %84 = vmatprep.subr.mxu0 0.0
    %85 = vmatpush1.msra.mxu0 0.0
    %86 = vmatprep.subr.mxu0 0.0
    %87 = vmatpush1.msra.mxu0 0.0
    %88 = vmatprep.subr.mxu0 0.0
    %89 = vmatpush1.msra.mxu0 0.0
    %90 = vmatprep.subr.mxu0 0.0
    %91 = vmatpush1.msra.mxu0 0.0
    %92 = vmatprep.subr.mxu0 0.0
    %93 = vmatpush1.msra.mxu0 0.0
    %94 = vmatprep.subr.mxu0 0.0
    %95 = vmatpush1.msra.mxu0 0.0
    %96 = vmatprep.subr.mxu0 0.0
    %97 = vmatpush1.msra.mxu0 0.0
    %98 = vmatprep.subr.mxu0 0.0
    %99 = vmatpush1.msra.mxu0 0.0
    %100 = vmatprep.subr.mxu0 0.0
    %101 = vmatpush1.msra.mxu0 0.0
    %102 = vmatprep.mubr.f32.mxu0 0.0
    %103 = vmatmul.mubr.f32.gmra.mrb[0].mxu0 %v36
    %v104 = vpop.f32.mrb[0].mxu0
    %v105 = vadd.f32 %v32, %v104
    %v106 = vpop.f32.mrb[0].mxu0
    %107 = vdwg.mxu0
    %108 = vst [vmem:[#allocation2] sm:$0xff] %v105
    // Predicated region
    $region14: #{embedding_block.1} parent=1 // pred_check
      _
    $region15: #{embedding_block.1} parent=1 // pred_check_branch
      %110 = sbr.rel (0) target = $region17
    $region16: #{embedding_block.1} parent=1 // pred_region
      %s112 = ssub.s32 128, 128
      %113 = vsyncadd [#allocation3], %s112
      %s115 = sshll.u32 [#allocation2], 4
      %s116 = int_to_ptr.vmem [resolvable:$true] %s115
      %118 = dma.vmem_to_hbm [thread:$0]  %s116, 128, %s3, [#allocation3]
    $region17: #{embedding_block.1} parent=1 // pred_fallthru
      _
    // Predicated region
    $region18: #{embedding_block.1} parent=1 // pred_check
      _
    $region19: #{embedding_block.1} parent=1 // pred_check_branch
      %120 = sbr.rel (0) target = $region21
    $region20: #{embedding_block.1} parent=1 // pred_region
      %121 = dma.done [#allocation3], 128
    $region21: #{embedding_block.1} parent=1 // pred_fallthru
      _
    %122 = vsyncpa [#allocation3], 1

</llo_original>
